<compile_context>
chip_gen: v7x
topology: tpu7x:2x2x1
jax: 0.10.0
libtpu: 0.0.40
codegen_flags: <defaults>
</compile_context>

<pallas_src>
import functools

import jax
import jax.numpy as jnp
import numpy as np
from jax.experimental import pallas as pl
from jax.experimental.pallas import tpu as pltpu


def _round_up(x, m):
    return ((x + m - 1) // m) * m


# ----------------------------------------------------------------------------
# Kernel: per-tile focal / intersection partial sums + final scalar combine
# ----------------------------------------------------------------------------
def _combined_loss_kernel(logits_ref, tgt_ref, out_ref, f_acc, i_acc, *,
                          num_classes, hw_actual, m_total, tile_s,
                          alpha, gamma, smooth, dice_weight, ignore_index,
                          needs_mask):
    n_id = pl.program_id(0)
    j_id = pl.program_id(1)

    @pl.when((n_id == 0) & (j_id == 0))
    def _():
        f_acc[...] = jnp.zeros_like(f_acc)
        i_acc[...] = jnp.zeros_like(i_acc)

    tgt = tgt_ref[...]                                   # (TS, 128) int32
    is_ignore = tgt == ignore_index
    tgt_safe = jnp.where(is_ignore, 0, tgt)              # ignore -> class 0

    # Pass 1: running max over the (small, static) class axis; upcast in-kernel.
    mx = logits_ref[0].astype(jnp.float32)               # (TS, 128)
    for c in range(1, num_classes):
        mx = jnp.maximum(mx, logits_ref[c].astype(jnp.float32))

    # Pass 2: softmax denominator + shifted logit of the (remapped) target class.
    z0 = logits_ref[0].astype(jnp.float32) - mx
    sez = jnp.exp(z0)
    z_t = jnp.where(tgt_safe == 0, z0, 0.0)
    for c in range(1, num_classes):
        zc = logits_ref[c].astype(jnp.float32) - mx
        sez = sez + jnp.exp(zc)
        z_t = jnp.where(tgt_safe == c, zc, z_t)

    logp_t = z_t - jnp.log(sez)       # log softmax at target (un-zeroed)
    p_t = jnp.exp(logp_t)             # softmax prob at target = dice intersection term
    ce = -logp_t                      # raw cross entropy (ignore handled below)

    g = float(gamma)
    one_m_pt = 1.0 - p_t
    if g.is_integer() and g >= 0:
        w = jnp.ones_like(p_t)
        for _ in range(int(g)):                          # static unroll
            w = w * one_m_pt
    else:
        w = jnp.power(jnp.maximum(one_m_pt, 0.0), g)
    focal = alpha * w * ce
    focal = jnp.where(is_ignore, 0.0, focal)             # ignored pixels -> 0

    if needs_mask:
        # Mask pixels beyond the real H*W extent (ragged / padded tail).
        sub = jax.lax.broadcasted_iota(jnp.int32, (tile_s, 128), 0)
        lane = jax.lax.broadcasted_iota(jnp.int32, (tile_s, 128), 1)
        px = (j_id * tile_s + sub) * 128 + lane
        valid = px < hw_actual
        focal = jnp.where(valid, focal, 0.0)
        p_t = jnp.where(valid, p_t, 0.0)

    f_acc[...] += focal
    i_acc[...] += p_t

    @pl.when((n_id == pl.num_programs(0) - 1)
             & (j_id == pl.num_programs(1) - 1))
    def _():
        fs = jnp.sum(jnp.sum(f_acc[...], axis=0, keepdims=True),
                     axis=1, keepdims=True)              # (1, 1)
        isum = jnp.sum(jnp.sum(i_acc[...], axis=0, keepdims=True),
                       axis=1, keepdims=True)            # (1, 1)
        focal_mean = fs * (1.0 / float(m_total))
        # sum(softmax) == sum(onehot) == M per pixel, so the dice denominator
        # collapses to 2*M + smooth (matches reference up to f32 rounding).
        dice = (2.0 * isum + smooth) / (2.0 * float(m_total) + smooth)
        total = (1.0 - dice_weight) * focal_mean + dice_weight * (1.0 - dice)
        out_ref[...] = total.astype(out_ref.dtype)


# ----------------------------------------------------------------------------
# Wrapper
# ----------------------------------------------------------------------------
def combined_loss(inputs, targets, *, alpha=1.0, gamma=2.0, dice_weight=0.5,
                  ignore_index=-100, smooth=1.0):
    """inputs: (N, C, H, W) logits (any float dtype); targets: (N, H, W) ints."""
    N, C, H, W = inputs.shape
    assert targets.shape == (N, H, W)
    # TODO(synk): C == 1 sigmoid/one-class Dice path not implemented (the
    #             PyTorch branch `inputs.size(1) > 1` is assumed true).
    assert C > 1, "single-channel (sigmoid) path not implemented"
    HW = H * W
    M = N * HW

    # Free relayout: (N,C,H,W) -> (N,C,HW) -> (N,C,HW/128,128). No transpose,
    # no dtype cast, no HBM copy of the logits.
    HWp = _round_up(HW, 128)
    x = inputs.reshape(N, C, HW)
    t = targets.astype(jnp.int32).reshape(N, HW)
    if HWp != HW:
        # Only when H*W is not a multiple of 128 (uncommon); padded pixels are
        # masked inside the kernel.
        x = jnp.pad(x, ((0, 0), (0, 0), (0, HWp - HW)))
        t = jnp.pad(t, ((0, 0), (0, HWp - HW)), constant_values=ignore_index)
    hwu = HWp // 128
    x = x.reshape(N, C, hwu, 128)
    t = t.reshape(N, hwu, 128)

    # VMEM-aware tile sizing (v5e/v6e: 128 MiB, v7x: 64 MiB per TensorCore).
    itemsize = jnp.dtype(inputs.dtype).itemsize
    try:
        vmem_cap = int(pltpu.get_tpu_info().vmem_capacity_bytes)
    except Exception:
        vmem_cap = 64 << 20                       # conservative default
    budget = vmem_cap // 2
    # Bytes per 128-pixel group: double-buffered logits + target blocks plus
    # the two f32 accumulators.
    per_unit = 128 * (2 * (C * itemsize + 4) + 2 * 4)
    ts = max(8, budget // per_unit)
    if ts >= hwu:
        ts = hwu                                  # whole image per grid step
    else:
        ts = max(8, (ts // 8) * 8)                # keep (8,128) alignment
    num_tiles = pl.cdiv(hwu, ts)
    needs_mask = (HWp != HW) or (hwu % ts != 0)

    need = ts * per_unit + (2 << 20)
    vmem_limit = int(min(max(need, 32 << 20), (vmem_cap * 3) // 4))

    kernel = functools.partial(
        _combined_loss_kernel,
        num_classes=C, hw_actual=HW, m_total=M, tile_s=ts,
        alpha=float(alpha), gamma=float(gamma), smooth=float(smooth),
        dice_weight=float(dice_weight), ignore_index=int(ignore_index),
        needs_mask=needs_mask)

    # TODO(synk): v7x dual-TensorCore split (per-core accumulators + (2,1)
    #             partial output) not implemented; grid stays sequential.
    out = pl.pallas_call(
        kernel,
        out_shape=jax.ShapeDtypeStruct((1, 1), jnp.float32),
        grid_spec=pltpu.PrefetchScalarGridSpec(
            num_scalar_prefetch=0,
            grid=(N, num_tiles),
            in_specs=[
                pl.BlockSpec((None, C, ts, 128), lambda n, j: (n, 0, j, 0)),
                pl.BlockSpec((None, ts, 128), lambda n, j: (n, j, 0)),
            ],
            out_specs=pl.BlockSpec((1, 1), lambda n, j: (0, 0)),
            scratch_shapes=[pltpu.VMEM((ts, 128), jnp.float32),
                            pltpu.VMEM((ts, 128), jnp.float32)],
        ),
        compiler_params=pltpu.CompilerParams(
            dimension_semantics=("arbitrary", "arbitrary"),
            vmem_limit_bytes=vmem_limit),
    )(x, t)
    return out[0, 0]


# ----------------------------------------------------------------------------
# Pure-JAX reference (for correctness check)
# ----------------------------------------------------------------------------
def _reference_loss(inputs, targets, alpha=1.0, gamma=2.0, dice_weight=0.5,
                    ignore_index=-100, smooth=1.0):
    N, C, H, W = inputs.shape
    logp = jax.nn.log_softmax(inputs, axis=1)
    probs = jax.nn.softmax(inputs, axis=1)
    valid = targets != ignore_index
    t_safe = jnp.where(valid, targets, 0)
    onehot = jax.nn.one_hot(t_safe, C, axis=1, dtype=inputs.dtype)
    ce = -jnp.sum(logp * onehot, axis=1)
    ce = jnp.where(valid, ce, 0.0)
    pt = jnp.exp(-ce)
    focal = jnp.mean(alpha * (1.0 - pt) ** gamma * ce)
    inter = jnp.sum(probs * onehot)
    dice = (2.0 * inter + smooth) / (jnp.sum(probs) + jnp.sum(onehot) + smooth)
    return (1.0 - dice_weight) * focal + dice_weight * (1.0 - dice)


# ----------------------------------------------------------------------------
if __name__ == "__main__":
    key = jax.random.PRNGKey(0)
    k1, k2, k3 = jax.random.split(key, 3)
    N, C, H, W = 2, 4, 16, 16
    logits = jax.random.normal(k1, (N, C, H, W), jnp.float32) * 2.0
    targets = jax.random.randint(k2, (N, H, W), 0, C, dtype=jnp.int32)
    # sprinkle some ignore_index pixels to exercise the ignore path
    ignore_mask = jax.random.uniform(k3, (N, H, W)) < 0.1
    targets = jnp.where(ignore_mask, jnp.int32(-100), targets)

    loss_fn = jax.jit(combined_loss)
    loss = jax.block_until_ready(loss_fn(logits, targets))

    ref = jax.block_until_ready(_reference_loss(logits, targets))
    assert loss.shape == () and loss.dtype == jnp.float32
    assert bool(jnp.isfinite(loss))
    np.testing.assert_allclose(np.asarray(loss), np.asarray(ref),
                               rtol=1e-5, atol=1e-5)
    print("KERNEL_OK")
</pallas_src>

<mosaic_0001>
module attributes {stable_mosaic.version = 11 : i64} {
  func.func @_combined_loss_kernel(%arg0: i32, %arg1: i32, %arg2: memref<1x4x2x128xf32, #tpu.memory_space<vmem>>, %arg3: memref<1x2x128xi32, #tpu.memory_space<vmem>>, %arg4: memref<1x1xf32, #tpu.memory_space<vmem>>, %arg5: memref<2x128xf32, #tpu.memory_space<vmem>>, %arg6: memref<2x128xf32, #tpu.memory_space<vmem>>) attributes {dimension_semantics = [#tpu.dimension_semantics<arbitrary>, #tpu.dimension_semantics<arbitrary>], iteration_bounds = array<i64: 2, 1>, scalar_prefetch = 0 : i64, scratch_operands = 2 : i64, tpu.core_type = #tpu.core_type<tc>, window_params = [{transform_indices = @transform_0, window_bounds = array<i64: 1, 4, 2, 128>}, {transform_indices = @transform_1, window_bounds = array<i64: 1, 2, 128>}, {pipeline_mode = #tpu.pipeline_mode<synchronous>, transform_indices = @transform_2, window_bounds = array<i64: 1, 1>}]} {
    %c0_i32 = arith.constant 0 : i32
    %0 = arith.cmpi eq, %arg0, %c0_i32 : i32
    %c0_i32_0 = arith.constant 0 : i32
    %1 = arith.cmpi eq, %arg1, %c0_i32_0 : i32
    %2 = arith.andi %0, %1 : i1
    %3 = arith.extui %2 : i1 to i32
    %c0_i32_1 = arith.constant 0 : i32
    %4 = arith.cmpi ne, %3, %c0_i32_1 : i32
    scf.if %4 {
      %cst_51 = arith.constant 0.000000e+00 : f32
      %80 = vector.broadcast %cst_51 : f32 to vector<2x128xf32>
      %c0_52 = arith.constant 0 : index
      %c0_53 = arith.constant 0 : index
      %81 = vector.load %arg5[%c0_52, %c0_53] : memref<2x128xf32, #tpu.memory_space<vmem>>, vector<2x128xf32>
      tpu.vector_store %arg5[%c0_52, %c0_53], %80 {strides = array<i32>} : memref<2x128xf32, #tpu.memory_space<vmem>>, vector<2x128xf32>,
      %cst_54 = arith.constant 0.000000e+00 : f32
      %82 = vector.broadcast %cst_54 : f32 to vector<2x128xf32>
      %c0_55 = arith.constant 0 : index
      %c0_56 = arith.constant 0 : index
      %83 = vector.load %arg6[%c0_55, %c0_56] : memref<2x128xf32, #tpu.memory_space<vmem>>, vector<2x128xf32>
      tpu.vector_store %arg6[%c0_55, %c0_56], %82 {strides = array<i32>} : memref<2x128xf32, #tpu.memory_space<vmem>>, vector<2x128xf32>,
    } else {
    }
    %c0 = arith.constant 0 : index
    %c0_2 = arith.constant 0 : index
    %c0_3 = arith.constant 0 : index
    %5 = vector.load %arg3[%c0, %c0_2, %c0_3] : memref<1x2x128xi32, #tpu.memory_space<vmem>>, vector<1x2x128xi32>
    %6 = vector.shape_cast %5 : vector<1x2x128xi32> to vector<2x128xi32>
    %c-100_i32 = arith.constant -100 : i32
    %7 = vector.broadcast %c-100_i32 : i32 to vector<2x128xi32>
    %8 = arith.cmpi eq, %6, %7 : vector<2x128xi32>
    %c0_i32_4 = arith.constant 0 : i32
    %9 = vector.broadcast %c0_i32_4 : i32 to vector<2x128xi32>
    %10 = arith.select %8, %9, %6 : vector<2x128xi1>, vector<2x128xi32>
    %c0_5 = arith.constant 0 : index
    %c0_6 = arith.constant 0 : index
    %c0_7 = arith.constant 0 : index
    %c0_8 = arith.constant 0 : index
    %11 = vector.load %arg2[%c0_5, %c0_6, %c0_7, %c0_8] : memref<1x4x2x128xf32, #tpu.memory_space<vmem>>, vector<1x1x2x128xf32>
    %12 = vector.shape_cast %11 : vector<1x1x2x128xf32> to vector<2x128xf32>
    %c0_9 = arith.constant 0 : index
    %c1 = arith.constant 1 : index
    %c0_10 = arith.constant 0 : index
    %c0_11 = arith.constant 0 : index
    %13 = vector.load %arg2[%c0_9, %c1, %c0_10, %c0_11] : memref<1x4x2x128xf32, #tpu.memory_space<vmem>>, vector<1x1x2x128xf32>
    %14 = vector.shape_cast %13 : vector<1x1x2x128xf32> to vector<2x128xf32>
    %15 = arith.maximumf %12, %14 : vector<2x128xf32>
    %c0_12 = arith.constant 0 : index
    %c2 = arith.constant 2 : index
    %c0_13 = arith.constant 0 : index
    %c0_14 = arith.constant 0 : index
    %16 = vector.load %arg2[%c0_12, %c2, %c0_13, %c0_14] : memref<1x4x2x128xf32, #tpu.memory_space<vmem>>, vector<1x1x2x128xf32>
    %17 = vector.shape_cast %16 : vector<1x1x2x128xf32> to vector<2x128xf32>
    %18 = arith.maximumf %15, %17 : vector<2x128xf32>
    %c0_15 = arith.constant 0 : index
    %c3 = arith.constant 3 : index
    %c0_16 = arith.constant 0 : index
    %c0_17 = arith.constant 0 : index
    %19 = vector.load %arg2[%c0_15, %c3, %c0_16, %c0_17] : memref<1x4x2x128xf32, #tpu.memory_space<vmem>>, vector<1x1x2x128xf32>
    %20 = vector.shape_cast %19 : vector<1x1x2x128xf32> to vector<2x128xf32>
    %21 = arith.maximumf %18, %20 : vector<2x128xf32>
    %c0_18 = arith.constant 0 : index
    %c0_19 = arith.constant 0 : index
    %c0_20 = arith.constant 0 : index
    %c0_21 = arith.constant 0 : index
    %22 = vector.load %arg2[%c0_18, %c0_19, %c0_20, %c0_21] : memref<1x4x2x128xf32, #tpu.memory_space<vmem>>, vector<1x1x2x128xf32>
    %23 = vector.shape_cast %22 : vector<1x1x2x128xf32> to vector<2x128xf32>
    %24 = arith.subf %23, %21 : vector<2x128xf32>
    %25 = math.exp %24 : vector<2x128xf32>
    %c0_i32_22 = arith.constant 0 : i32
    %26 = vector.broadcast %c0_i32_22 : i32 to vector<2x128xi32>
    %27 = arith.cmpi eq, %10, %26 : vector<2x128xi32>
    %cst = arith.constant 0.000000e+00 : f32
    %28 = vector.broadcast %cst : f32 to vector<2x128xf32>
    %29 = arith.select %27, %24, %28 : vector<2x128xi1>, vector<2x128xf32>
    %c0_23 = arith.constant 0 : index
    %c1_24 = arith.constant 1 : index
    %c0_25 = arith.constant 0 : index
    %c0_26 = arith.constant 0 : index
    %30 = vector.load %arg2[%c0_23, %c1_24, %c0_25, %c0_26] : memref<1x4x2x128xf32, #tpu.memory_space<vmem>>, vector<1x1x2x128xf32>
    %31 = vector.shape_cast %30 : vector<1x1x2x128xf32> to vector<2x128xf32>
    %32 = arith.subf %31, %21 : vector<2x128xf32>
    %33 = math.exp %32 : vector<2x128xf32>
    %34 = arith.addf %25, %33 : vector<2x128xf32>
    %c1_i32 = arith.constant 1 : i32
    %35 = vector.broadcast %c1_i32 : i32 to vector<2x128xi32>
    %36 = arith.cmpi eq, %10, %35 : vector<2x128xi32>
    %37 = arith.select %36, %32, %29 : vector<2x128xi1>, vector<2x128xf32>
    %c0_27 = arith.constant 0 : index
    %c2_28 = arith.constant 2 : index
    %c0_29 = arith.constant 0 : index
    %c0_30 = arith.constant 0 : index
    %38 = vector.load %arg2[%c0_27, %c2_28, %c0_29, %c0_30] : memref<1x4x2x128xf32, #tpu.memory_space<vmem>>, vector<1x1x2x128xf32>
    %39 = vector.shape_cast %38 : vector<1x1x2x128xf32> to vector<2x128xf32>
    %40 = arith.subf %39, %21 : vector<2x128xf32>
    %41 = math.exp %40 : vector<2x128xf32>
    %42 = arith.addf %34, %41 : vector<2x128xf32>
    %c2_i32 = arith.constant 2 : i32
    %43 = vector.broadcast %c2_i32 : i32 to vector<2x128xi32>
    %44 = arith.cmpi eq, %10, %43 : vector<2x128xi32>
    %45 = arith.select %44, %40, %37 : vector<2x128xi1>, vector<2x128xf32>
    %c0_31 = arith.constant 0 : index
    %c3_32 = arith.constant 3 : index
    %c0_33 = arith.constant 0 : index
    %c0_34 = arith.constant 0 : index
    %46 = vector.load %arg2[%c0_31, %c3_32, %c0_33, %c0_34] : memref<1x4x2x128xf32, #tpu.memory_space<vmem>>, vector<1x1x2x128xf32>
    %47 = vector.shape_cast %46 : vector<1x1x2x128xf32> to vector<2x128xf32>
    %48 = arith.subf %47, %21 : vector<2x128xf32>
    %49 = math.exp %48 : vector<2x128xf32>
    %50 = arith.addf %42, %49 : vector<2x128xf32>
    %c3_i32 = arith.constant 3 : i32
    %51 = vector.broadcast %c3_i32 : i32 to vector<2x128xi32>
    %52 = arith.cmpi eq, %10, %51 : vector<2x128xi32>
    %53 = arith.select %52, %48, %45 : vector<2x128xi1>, vector<2x128xf32>
    %54 = math.log %50 : vector<2x128xf32>
    %55 = arith.subf %53, %54 : vector<2x128xf32>
    %56 = math.exp %55 : vector<2x128xf32>
    %cst_35 = arith.constant 0.000000e+00 : f32
    %57 = vector.broadcast %cst_35 : f32 to vector<2x128xf32>
    %58 = arith.subf %57, %55 : vector<2x128xf32>
    %cst_36 = arith.constant 1.000000e+00 : f32
    %59 = vector.broadcast %cst_36 : f32 to vector<2x128xf32>
    %60 = arith.subf %59, %56 : vector<2x128xf32>
    %cst_37 = arith.constant 1.000000e+00 : f32
    %61 = vector.broadcast %cst_37 : f32 to vector<2x128xf32>
    %62 = arith.mulf %61, %60 : vector<2x128xf32>
    %63 = arith.mulf %62, %60 : vector<2x128xf32>
    %cst_38 = arith.constant 1.000000e+00 : f32
    %64 = vector.broadcast %cst_38 : f32 to vector<2x128xf32>
    %65 = arith.mulf %64, %63 : vector<2x128xf32>
    %66 = arith.mulf %65, %58 : vector<2x128xf32>
    %cst_39 = arith.constant 0.000000e+00 : f32
    %67 = vector.broadcast %cst_39 : f32 to vector<2x128xf32>
    %68 = arith.select %8, %67, %66 : vector<2x128xi1>, vector<2x128xf32>
    %c0_40 = arith.constant 0 : index
    %c0_41 = arith.constant 0 : index
    %69 = vector.load %arg5[%c0_40, %c0_41] : memref<2x128xf32, #tpu.memory_space<vmem>>, vector<2x128xf32>
    %70 = arith.addf %69, %68 : vector<2x128xf32>
    %c0_42 = arith.constant 0 : index
    %c0_43 = arith.constant 0 : index
    %71 = vector.load %arg5[%c0_42, %c0_43] : memref<2x128xf32, #tpu.memory_space<vmem>>, vector<2x128xf32>
    tpu.vector_store %arg5[%c0_42, %c0_43], %70 {strides = array<i32>} : memref<2x128xf32, #tpu.memory_space<vmem>>, vector<2x128xf32>,
    %c0_44 = arith.constant 0 : index
    %c0_45 = arith.constant 0 : index
    %72 = vector.load %arg6[%c0_44, %c0_45] : memref<2x128xf32, #tpu.memory_space<vmem>>, vector<2x128xf32>
    %73 = arith.addf %72, %56 : vector<2x128xf32>
    %c0_46 = arith.constant 0 : index
    %c0_47 = arith.constant 0 : index
    %74 = vector.load %arg6[%c0_46, %c0_47] : memref<2x128xf32, #tpu.memory_space<vmem>>, vector<2x128xf32>
    tpu.vector_store %arg6[%c0_46, %c0_47], %73 {strides = array<i32>} : memref<2x128xf32, #tpu.memory_space<vmem>>, vector<2x128xf32>,
    %c1_i32_48 = arith.constant 1 : i32
    %75 = arith.cmpi eq, %arg0, %c1_i32_48 : i32
    %c0_i32_49 = arith.constant 0 : i32
    %76 = arith.cmpi eq, %arg1, %c0_i32_49 : i32
    %77 = arith.andi %75, %76 : i1
    %78 = arith.extui %77 : i1 to i32
    %c0_i32_50 = arith.constant 0 : i32
    %79 = arith.cmpi ne, %78, %c0_i32_50 : i32
    scf.if %79 {
      %c0_51 = arith.constant 0 : index
      %c0_52 = arith.constant 0 : index
      %80 = vector.load %arg5[%c0_51, %c0_52] : memref<2x128xf32, #tpu.memory_space<vmem>>, vector<2x128xf32>
      %cst_53 = arith.constant dense<0.000000e+00> : vector<128xf32>
      %81 = vector.multi_reduction <add>, %80, %cst_53 [0] : vector<2x128xf32> to vector<128xf32>
      %82 = vector.shape_cast %81 : vector<128xf32> to vector<1x128xf32>
      %cst_54 = arith.constant dense<0.000000e+00> : vector<1xf32>
      %83 = vector.multi_reduction <add>, %82, %cst_54 [1] : vector<1x128xf32> to vector<1xf32>
      %84 = vector.shape_cast %83 : vector<1xf32> to vector<1x1xf32>
      %c0_55 = arith.constant 0 : index
      %c0_56 = arith.constant 0 : index
      %85 = vector.load %arg6[%c0_55, %c0_56] : memref<2x128xf32, #tpu.memory_space<vmem>>, vector<2x128xf32>
      %cst_57 = arith.constant dense<0.000000e+00> : vector<128xf32>
      %86 = vector.multi_reduction <add>, %85, %cst_57 [0] : vector<2x128xf32> to vector<128xf32>
      %87 = vector.shape_cast %86 : vector<128xf32> to vector<1x128xf32>
      %cst_58 = arith.constant dense<0.000000e+00> : vector<1xf32>
      %88 = vector.multi_reduction <add>, %87, %cst_58 [1] : vector<1x128xf32> to vector<1xf32>
      %89 = vector.shape_cast %88 : vector<1xf32> to vector<1x1xf32>
      %cst_59 = arith.constant 0.001953125 : f32
      %90 = vector.broadcast %cst_59 : f32 to vector<1x1xf32>
      %91 = arith.mulf %84, %90 : vector<1x1xf32>
      %cst_60 = arith.constant 2.000000e+00 : f32
      %92 = vector.broadcast %cst_60 : f32 to vector<1x1xf32>
      %93 = arith.mulf %92, %89 : vector<1x1xf32>
      %cst_61 = arith.constant 1.000000e+00 : f32
      %94 = vector.broadcast %cst_61 : f32 to vector<1x1xf32>
      %95 = arith.addf %93, %94 : vector<1x1xf32>
      %cst_62 = arith.constant 1.025000e+03 : f32
      %96 = vector.broadcast %cst_62 : f32 to vector<1x1xf32>
      %97 = arith.divf %95, %96 : vector<1x1xf32>
      %cst_63 = arith.constant 5.000000e-01 : f32
      %98 = vector.broadcast %cst_63 : f32 to vector<1x1xf32>
      %99 = arith.mulf %98, %91 : vector<1x1xf32>
      %cst_64 = arith.constant 1.000000e+00 : f32
      %100 = vector.broadcast %cst_64 : f32 to vector<1x1xf32>
      %101 = arith.subf %100, %97 : vector<1x1xf32>
      %cst_65 = arith.constant 5.000000e-01 : f32
      %102 = vector.broadcast %cst_65 : f32 to vector<1x1xf32>
      %103 = arith.mulf %102, %101 : vector<1x1xf32>
      %104 = arith.addf %99, %103 : vector<1x1xf32>
      %c0_66 = arith.constant 0 : index
      %c0_67 = arith.constant 0 : index
      %105 = vector.load %arg4[%c0_66, %c0_67] : memref<1x1xf32, #tpu.memory_space<vmem>>, vector<1x1xf32>
      tpu.vector_store %arg4[%c0_66, %c0_67], %104 {strides = array<i32>} : memref<1x1xf32, #tpu.memory_space<vmem>>, vector<1x1xf32>,
    } else {
    }
    return
  }
  func.func @transform_0(%arg0: i32, %arg1: i32) -> (i32, i32, i32, i32) {
    %c0_i32 = arith.constant 0 : i32
    %c0_i32_0 = arith.constant 0 : i32
    %c0_i32_1 = arith.constant 0 : i32
    return %arg0, %c0_i32, %arg1, %c0_i32_0 : i32, i32, i32, i32
  }
  func.func @transform_1(%arg0: i32, %arg1: i32) -> (i32, i32, i32) {
    %c0_i32 = arith.constant 0 : i32
    %c0_i32_0 = arith.constant 0 : i32
    return %arg0, %arg1, %c0_i32 : i32, i32, i32
  }
  func.func @transform_2(%arg0: i32, %arg1: i32) -> (i32, i32) {
    %c0_i32 = arith.constant 0 : i32
    %c0_i32_0 = arith.constant 0 : i32
    %c0_i32_1 = arith.constant 0 : i32
    return %c0_i32, %c0_i32_0 : i32, i32
  }
}

</mosaic_0001>

<llo_original>
// kernel: combined_loss.1
$region0: #{combined_loss.1}
  #allocation0 [shape = 'u32[]', space=smem, size = 0x4, offset = 0x4, fixed_abs, tag = 'smem constant byte address 0x4 - core index']
  #allocation1 [shape = 'u32[144,128]{1,0:T(1,128)}', space=vmem, size = 0x12000, scoped, tag = 'internal scratch']
  #allocation2 [shape = 'f32[2,128]{1,0:T(2,128)}', space=vmem, size = 0x400, scoped, tag = 'scratch operand']
  #allocation3 [shape = 'f32[2,128]{1,0:T(2,128)}', space=vmem, size = 0x400, scoped, tag = 'scratch operand']
  %s0 = inlined_call_operand.vmem [shape: f32[2,4,2,128], index: 0, kind: input, shape index: {}]
  %s1 = inlined_call_operand.vmem [shape: s32[2,2,128], index: 1, kind: input, shape index: {}]
  %s2 = inlined_call_operand.hbm [shape: f32[1,1], index: 2, kind: output, shape index: {}]
  %s3 = sld [smem:[#allocation0]]
  $region49: #{combined_loss.1} parent=0
    _
  %s5 = ssub.s32 1, %s3
  %s6 = scalar_select 0, %s5, %s3
  $region1: #{combined_loss.1} parent=0
    #allocation4 [shape = 'u8[512]{0}', space=vmem, size = 0x400, scoped, tag = 'output window, operand 0, single buffered']
    #allocation5 [shape = 's32[2]{0}', space=sflag, size = 0x8, scoped, tag = 'scoped memory for combined_loss.1']
    %7 = vsyncpa [#allocation5], 0
    loop: start=0, step=1, limit=4
    $region2: #{combined_loss.1} parent=1 // loop_pre_header
      _
    $region3: #{combined_loss.1} parent=1 // loop_header
      %s9 = sphi 0, %s13
      %p10 = scmp.ge.s32.totalorder %s9, 4
      %s16 = sphi 0, %s28
      %s17 = sphi 0, %s24
      %s18 = sphi 0, %s16
      %s19 = sphi 0, %s17
      %s20 = sphi 0, %s18
      %s21 = sphi 0, %s19
      %s33 = sphi 0, %s35
      %s36 = sphi 0, %s33
      %s37 = sphi 0, %s36
      %s53 = sphi 0, %s37
      %s61 = sphi 0, %s63
      %s64 = sphi 0, %s61
      %s65 = sphi 0, %s64
      %s81 = sphi 0, %s65
      %s85 = sphi 0, %s85
      %s87 = sphi 0, %s85
      %s88 = sphi 0, %s87
      %s102 = sphi 0, %s88
    $region4: #{combined_loss.1} parent=1 // loop_header_branch
      %12 = sbr.rel (%p10) target = $region8
    $region5: #{combined_loss.1} parent=1 // loop_body
      %s14 = ssub.s32 %s9, 1
      %s15 = ssub.s32 %s9, 2
      %s22 = sadd.s32 1, %s17
      %p23 = scmp.ge.s32.totalorder %s22, 1
      %s24 = scalar_select %p23, 0, %s22
      %s25 = sadd.s32 1, %s16
      %s26 = scalar_select %p23, %s25, %s16
      %p27 = scmp.ge.s32.totalorder %s26, 2
      %s28 = scalar_select %p27, 0, %s26
      %s29 = ssub.s32 %s16, %s28
      %s30 = ssub.s32 %s17, %s24
      %s31 = sor.u32 %s29, %s30
      %p32 = scmp.eq.s32.totalorder %s31, 0
      %s34 = sadd.s32 %s33, 1
      %s35 = scalar_select %p32, %s33, %s34
      %p38 = pneg %p32
      %p39 = scmp.eq.s32.totalorder %s9, 1
      %p40 = por %p38, %p39
      %p41 = scmp.ne.s32.totalorder %s33, %s36
      %p42 = scmp.eq.s32.totalorder %s9, 0
      %p43 = por %p41, %p42
      %p44 = scmp.ne.s32.totalorder %s33, %s36
      %p45 = scmp.eq.s32.totalorder %s14, 1
      %p46 = por %p44, %p45
      %p47 = scmp.ne.s32.totalorder %s36, %s37
      %p48 = scmp.eq.s32.totalorder %s14, 0
      %p49 = por %p47, %p48
      %p50 = scmp.ne.s32.totalorder %s36, %s37
      %p51 = scmp.eq.s32.totalorder %s15, 1
      %p52 = por %p50, %p51
      %p54 = scmp.ne.s32.totalorder %s37, %s53
      %p55 = scmp.eq.s32.totalorder %s15, 0
      %p56 = por %p54, %p55
      %s57 = ssub.s32 %s16, %s28
      %s58 = ssub.s32 %s17, %s24
      %s59 = sor.u32 %s57, %s58
      %p60 = scmp.eq.s32.totalorder %s59, 0
      %s62 = sadd.s32 %s61, 1
      %s63 = scalar_select %p60, %s61, %s62
      %p66 = pneg %p60
      %p67 = scmp.eq.s32.totalorder %s9, 1
      %p68 = por %p66, %p67
      %p69 = scmp.ne.s32.totalorder %s61, %s64
      %p70 = scmp.eq.s32.totalorder %s9, 0
      %p71 = por %p69, %p70
      %p72 = scmp.ne.s32.totalorder %s61, %s64
      %p73 = scmp.eq.s32.totalorder %s14, 1
      %p74 = por %p72, %p73
      %p75 = scmp.ne.s32.totalorder %s64, %s65
      %p76 = scmp.eq.s32.totalorder %s14, 0
      %p77 = por %p75, %p76
      %p78 = scmp.ne.s32.totalorder %s64, %s65
      %p79 = scmp.eq.s32.totalorder %s15, 1
      %p80 = por %p78, %p79
      %p82 = scmp.ne.s32.totalorder %s65, %s81
      %p83 = scmp.eq.s32.totalorder %s15, 0
      %p84 = por %p82, %p83
      %s86 = sadd.s32 %s85, 1
      %p89 = scmp.eq.s32.totalorder %s9, 1
      %p90 = scmp.ne.s32.totalorder %s85, %s87
      %p91 = scmp.eq.s32.totalorder %s9, 0
      %p92 = por %p90, %p91
      %p93 = scmp.ne.s32.totalorder %s85, %s87
      %p94 = scmp.eq.s32.totalorder %s14, 1
      %p95 = por %p93, %p94
      %p96 = scmp.ne.s32.totalorder %s87, %s88
      %p97 = scmp.eq.s32.totalorder %s14, 0
      %p98 = por %p96, %p97
      %p99 = scmp.ne.s32.totalorder %s87, %s88
      %p100 = scmp.eq.s32.totalorder %s15, 1
      %p101 = por %p99, %p100
      %p103 = scmp.ne.s32.totalorder %s88, %s102
      %p104 = scmp.eq.s32.totalorder %s15, 0
      %p105 = por %p103, %p104
      %p106 = scmp.le.s32.totalorder 1, %s9
      %p107 = scmp.lt.s32.totalorder %s9, 3
      %p108 = pnand %p106, %p107
      %p109 = pneg %p108
      // Predicated region
      $region9: #{combined_loss.1} parent=5 // pred_check
        _
      $region10: #{combined_loss.1} parent=5 // pred_check_branch
        %111 = sbr.rel (%p108) target = $region12
      $region11: #{combined_loss.1} parent=5 // pred_region
        %s112 = ssub.s32 %s9, 1
      $region12: #{combined_loss.1} parent=5 // pred_fallthru
        _
      %p113 = scmp.lt.s32.totalorder %s9, 2
      // Predicated region
      $region13: #{combined_loss.1} parent=5 // pred_check
        %p114 = pneg %p113
      $region14: #{combined_loss.1} parent=5 // pred_check_branch
        %116 = sbr.rel (%p114) target = $region16
      $region15: #{combined_loss.1} parent=5 // pred_region
        // Predicated region
        $region17: #{combined_loss.1} parent=15 // pred_check
          %p117 = pneg %p43
        $region18: #{combined_loss.1} parent=15 // pred_check_branch
          %119 = sbr.rel (%p117) target = $region20
        $region19: #{combined_loss.1} parent=15 // pred_region
          %p120 = scmp.lt.s32.totalorder %s16, 1
          %s121 = scalar_select %p120, %s16, 1
          %p122 = scmp.lt.s32.totalorder %s17, 0
          %s123 = scalar_select %p122, %s17, 0
          %s124 = smul.addr %s121, 4
          %s125 = sadd.s32 %s123, %s124
          %s126 = smul.addr %s125, 2
          %s127 = scalar_lea.vmem %s0, %s126
        $region20: #{combined_loss.1} parent=15 // pred_fallthru
          _
        // Predicated region
        $region21: #{combined_loss.1} parent=15 // pred_check
          %p128 = pneg %p71
        $region22: #{combined_loss.1} parent=15 // pred_check_branch
          %130 = sbr.rel (%p128) target = $region24
        $region23: #{combined_loss.1} parent=15 // pred_region
          %p131 = scmp.lt.s32.totalorder %s16, 1
          %s132 = scalar_select %p131, %s16, 1
          %p133 = scmp.lt.s32.totalorder %s17, 0
          %s134 = scalar_select %p133, %s17, 0
          %s135 = sadd.s32 %s134, %s132
          %s136 = smul.addr %s135, 2
          %s137 = scalar_lea.vmem %s1, %s136
        $region24: #{combined_loss.1} parent=15 // pred_fallthru
          _
      $region16: #{combined_loss.1} parent=5 // pred_fallthru
        _
      %p138 = scmp.le.s32.totalorder 1, %s9
      %p139 = scmp.lt.s32.totalorder %s9, 3
      %p140 = pnand %p138, %p139
      %p141 = pneg %p140
      // Predicated region
      $region25: #{combined_loss.1} parent=5 // pred_check
        _
      $region26: #{combined_loss.1} parent=5 // pred_check_branch
        %143 = sbr.rel (%p140) target = $region28
      $region27: #{combined_loss.1} parent=5 // pred_region
        %s144 = ssub.s32 %s9, 1
        %p145 = scmp.lt.s32.totalorder %s18, 1
        %s146 = scalar_select %p145, %s18, 1
        %p147 = scmp.lt.s32.totalorder %s19, 0
        %s148 = scalar_select %p147, %s19, 0
        %s149 = smul.addr %s146, 4
        %s150 = sadd.s32 %s148, %s149
        %s151 = smul.addr %s150, 2
        %s152 = scalar_lea.vmem %s0, %s151
        %p153 = pneg %p49
        %p154 = pneg %p46
        %p155 = scmp.lt.s32.totalorder %s18, 1
        %s156 = scalar_select %p155, %s18, 1
        %p157 = scmp.lt.s32.totalorder %s19, 0
        %s158 = scalar_select %p157, %s19, 0
        %s159 = sadd.s32 %s158, %s156
        %s160 = smul.addr %s159, 2
        %s161 = scalar_lea.vmem %s1, %s160
        %p162 = pneg %p77
        %p163 = pneg %p74
        %p164 = pneg %p98
        %p165 = pneg %p95
        %p166 = scmp.lt.s32.totalorder %s18, 1
        %s167 = scalar_select %p166, %s18, 1
        %p168 = scmp.lt.s32.totalorder %s19, 0
        %s169 = scalar_select %p168, %s19, 0
        %s170 = smul.addr %s167, 4
        %s171 = sadd.s32 %s169, %s170
        %s172 = smul.addr %s171, 2
        %s173 = scalar_lea.vmem %s0, %s172
        %p174 = scmp.lt.s32.totalorder %s18, 1
        %s175 = scalar_select %p174, %s18, 1
        %p176 = scmp.lt.s32.totalorder %s19, 0
        %s177 = scalar_select %p176, %s19, 0
        %s178 = sadd.s32 %s177, %s175
        %s179 = smul.addr %s178, 2
        %s180 = scalar_lea.vmem %s1, %s179
        %p181 = scmp.eq.s32.totalorder %s18, 0
        %p182 = scmp.eq.s32.totalorder %s19, 0
        %p183 = pnand %p181, %p182
        %p184 = pneg %p183
        // Predicated region
        $region29: #{combined_loss.1} parent=27 // pred_check
          _
        $region30: #{combined_loss.1} parent=27 // pred_check_branch
          %186 = sbr.rel (%p183) target = $region32
        $region31: #{combined_loss.1} parent=27 // pred_region
          %187 = vst [vmem:[#allocation2] sm:$0x3] 0.0
          %188 = vst [vmem:[#allocation3] sm:$0x3] 0.0
        $region32: #{combined_loss.1} parent=27 // pred_fallthru
          _
        %v189 = vld [vmem:[%s180] sm:$0x3]
        %vm190 = vcmp.eq.s32.totalorder %v189, 4294967196
        %v191 = vsel %vm190, 0, %v189
        %v192 = vld [vmem:[%s173] sm:$0x3]
        %s193 = scalar_lea.vmem %s173, 2
        %v194 = vld [vmem:[%s193] sm:$0x3]
        %v195 = vmax.f32 %v192, %v194
        %s196 = scalar_lea.vmem %s173, 4
        %v197 = vld [vmem:[%s196] sm:$0x3]
        %v198 = vmax.f32 %v195, %v197
        %s199 = scalar_lea.vmem %s173, 6
        %v200 = vld [vmem:[%s199] sm:$0x3]
        %v201 = vmax.f32 %v198, %v200
        %v202 = vsub.f32 %v192, %v201
        %v203 = vmul.f32 %v202, 1.442695
        %v204 = vpow.pop %v203
        %vm205 = vcmp.eq.s32.totalorder %v191, 0
        %v206 = vsel %vm205, %v202, 0.0
        %v207 = vsub.f32 %v194, %v201
        %v208 = vmul.f32 %v207, 1.442695
        %v209 = vpow.pop %v208
        %v210 = vadd.f32 %v204, %v209
        %vm211 = vcmp.eq.s32.totalorder %v191, 1
        %v212 = vsel %vm211, %v207, %v206
        %v213 = vsub.f32 %v197, %v201
        %v214 = vmul.f32 %v213, 1.442695
        %v215 = vpow.pop %v214
        %v216 = vadd.f32 %v210, %v215
        %vm217 = vcmp.eq.s32.totalorder %v191, 2
        %v218 = vsel %vm217, %v213, %v212
        %v219 = vsub.f32 %v200, %v201
        %v220 = vmul.f32 %v219, 1.442695
        %v221 = vpow.pop %v220
        %v222 = vadd.f32 %v216, %v221
        %vm223 = vcmp.eq.s32.totalorder %v191, 3
        %v224 = vsel %vm223, %v219, %v218
        %v225 = vlog2.pop %v222
        %v226 = vmul.f32 %v225, 0.6931472
        %v227 = vsub.f32 %v224, %v226
        %v228 = vmul.f32 %v227, 1.442695
        %v229 = vpow.pop %v228
        %v230 = vsub.f32 0.0, %v227
        %v231 = vsub.f32 1.0, %v229
        %v232 = vmul.f32 %v231, %v231
        %v233 = vmul.f32 %v232, %v230
        %v234 = vsel %vm190, 0.0, %v233
        %v235 = vld [vmem:[#allocation2] sm:$0x3]
        %v236 = vadd.f32 %v235, %v234
        %237 = vst [vmem:[#allocation2] sm:$0x3] %v236
        %v238 = vld [vmem:[#allocation3] sm:$0x3]
        %v239 = vadd.f32 %v238, %v229
        %240 = vst [vmem:[#allocation3] sm:$0x3] %v239
        %p241 = scmp.eq.s32.totalorder %s18, 1
        %p242 = pnand %p241, %p182
        %p243 = pneg %p242
        // Predicated region
        $region33: #{combined_loss.1} parent=27 // pred_check
          _
        $region34: #{combined_loss.1} parent=27 // pred_check_branch
          %245 = sbr.rel (%p242) target = $region36
        $region35: #{combined_loss.1} parent=27 // pred_region
          %v246 = vld [vmem:[#allocation2] sm:$0x3]
          %vm247 = vcmask 1041408
          %v248 = vsel %vm247, %v246, 0.0
          %v249 = vrot.slane %v248, 4
          %v250 = vadd.f32 %v248, %v249
          %v251 = vrot.slane %v250, 2
          %v252 = vadd.f32 %v250, %v251
          %v253 = vrot.slane %v252, 1
          %v254 = vadd.f32 %v252, %v253
          %255 = vadd.xlane.f32.xlu0 %v254
          %v256 = vpop.xlane.xlu0 %255
          %v257 = vld [vmem:[#allocation3] sm:$0x3]
          %v258 = vsel %vm247, %v257, 0.0
          %v259 = vrot.slane %v258, 4
          %v260 = vadd.f32 %v258, %v259
          %v261 = vrot.slane %v260, 2
          %v262 = vadd.f32 %v260, %v261
          %v263 = vrot.slane %v262, 1
          %v264 = vadd.f32 %v262, %v263
          %265 = vadd.xlane.f32.xlu0 %v264
          %v266 = vpop.xlane.xlu0 %265
          %v267 = vmul.f32 %v256, 0.001953125
          %v268 = vmul.f32 %v266, 2.0
          %v269 = vadd.f32 %v268, 1.0
          %v270 = vrcp.pop 1025.0
          %v271 = vmul.f32 %v269, %v270
          %v272 = vmul.f32 %v267, 0.5
          %v273 = vsub.f32 1.0, %v271
          %v274 = vmul.f32 %v273, 0.5
          %v275 = vadd.f32 %v272, %v274
          %vm276 = vcmask 0
          %277 = vst.msk [vmem:[#allocation4] sm:$0x1] %vm276, %v275
        $region36: #{combined_loss.1} parent=27 // pred_fallthru
          _
        // Predicated region
        $region37: #{combined_loss.1} parent=27 // pred_check
          %p278 = pneg %p95
        $region38: #{combined_loss.1} parent=27 // pred_check_branch
          %280 = sbr.rel (%p278) target = $region40
        $region39: #{combined_loss.1} parent=27 // pred_region
          %s282 = ssub.s32 16, 16
          %283 = vsyncadd [#allocation5], %s282
          %s285 = sshll.u32 [#allocation4], 4
          %s286 = int_to_ptr.vmem [resolvable:$true] %s285
          %288 = dma.vmem_to_hbm [thread:$0]  %s286, 16, %s2, [#allocation5]
        $region40: #{combined_loss.1} parent=27 // pred_fallthru
          _
        // Predicated region
        $region41: #{combined_loss.1} parent=27 // pred_check
          %p289 = pneg %p95
        $region42: #{combined_loss.1} parent=27 // pred_check_branch
          %291 = sbr.rel (%p289) target = $region44
        $region43: #{combined_loss.1} parent=27 // pred_region
          %292 = dma.done [#allocation5], 16
        $region44: #{combined_loss.1} parent=27 // pred_fallthru
          _
      $region28: #{combined_loss.1} parent=5 // pred_fallthru
        _
      %p293 = scmp.le.s32.totalorder 2, %s9
      // Predicated region
      $region45: #{combined_loss.1} parent=5 // pred_check
        %p294 = pneg %p293
      $region46: #{combined_loss.1} parent=5 // pred_check_branch
        %296 = sbr.rel (%p294) target = $region48
      $region47: #{combined_loss.1} parent=5 // pred_region
        %s297 = ssub.s32 %s9, 2
      $region48: #{combined_loss.1} parent=5 // pred_fallthru
        _
    $region6: #{combined_loss.1} parent=1 // loop_footer
      %s13 = sadd.s32 1, %s9
    $region7: #{combined_loss.1} parent=1 // loop_footer_branch
      %8 = sbr.rel target = $region3
    $region8: #{combined_loss.1} parent=1 // loop_exit
      _
    %298 = vsyncpa [#allocation5], 1
    %s299 = scalar_lea.sflag [#allocation5], 1
    %300 = vsyncpa %s299, 1

</llo_original>
